<compile_context>
chip_gen: v5e
topology: v5e:2x2
jax: 0.10.0
libtpu: 0.0.40
codegen_flags: <defaults>
</compile_context>

<pallas_src>
import functools

import numpy as np
import jax
import jax.numpy as jnp
from jax.experimental import pallas as pl
from jax.experimental.pallas import tpu as pltpu

LANES = 128
SUBLANES = 8


# ----------------------------- fused Pallas kernel ---------------------------

def _fused_loss_kernel(a_ref, b_ref, pred_ref, gt_oh_ref, w_ref,
                       out_ref, acc_ref, *, inv_total, inv_plates):
    """Fused image-L1-mean + weighted one-hot cross-entropy.

    Grid: (num_parts, steps_per_part). Leading axis is 'parallel' (megacore
    sharding on v7x), trailing axis streams row tiles of the image slabs.

    a_ref, b_ref : (tile_rows, 128) native-dtype image tiles (cast in-kernel)
    pred_ref     : (N, K, C) f32 one-hot predictions (used as logits, matching
                   the torch code feeding one-hot into F.cross_entropy)
    gt_oh_ref    : (N, K, C) f32 one-hot targets
    w_ref        : (N, 1, C) f32 per-plate class weights
    out_ref      : (1, 1, 1) f32 per-part partial (L1 part; + CE on part 0)
    acc_ref      : (8, 128)  f32 VMEM scratch accumulator
    """
    p = pl.program_id(0)
    i = pl.program_id(1)
    last = pl.num_programs(1) - 1

    @pl.when(i == 0)
    def _init():
        acc_ref[...] = jnp.zeros_like(acc_ref)

    # Elementwise |a - b|; cast after the load so HBM traffic stays native.
    d = jnp.abs(a_ref[...].astype(jnp.float32) - b_ref[...].astype(jnp.float32))
    # Fold row tiles into the (8,128) accumulator: pure VPU adds, no per-step
    # XLU lane reduction and no per-step masked (1,1) store.
    acc_ref[...] += jnp.sum(d.reshape(-1, SUBLANES, LANES), axis=0)

    @pl.when(i == last)
    def _finalize():
        # One-time XLU reduction of the L1 accumulator; fold the 1/total mean.
        l1 = jnp.sum(acc_ref[...], axis=1, keepdims=True)          # (8, 1)
        l1 = jnp.sum(l1, axis=0, keepdims=True).reshape(1, 1, 1)   # (1, 1, 1)
        out_ref[...] = l1 * inv_total

        # Weighted one-hot cross-entropy: tiny (N*K*C elems), computed only on
        # part 0's last step, hidden under the mem-bound L1 loop's slack.
        @pl.when(p == 0)
        def _ce():
            x = pred_ref[...]                                      # (N, K, C)
            g = gt_oh_ref[...]                                     # (N, K, C)
            w = w_ref[...]                                         # (N, 1, C)
            m = jnp.max(x, axis=-1, keepdims=True)                 # (N, K, 1)
            lse = jnp.log(jnp.sum(jnp.exp(x - m), axis=-1, keepdims=True)) + m
            x_t = jnp.sum(x * g, axis=-1, keepdims=True)           # (N, K, 1)
            w_t = jnp.sum(w * g, axis=-1, keepdims=True)           # (N, K, 1)
            num = jnp.sum(w_t * (lse - x_t), axis=1, keepdims=True)  # (N,1,1)
            den = jnp.sum(w_t, axis=1, keepdims=True)                # (N,1,1)
            ce = jnp.sum(num / den, axis=0, keepdims=True) * inv_plates
            out_ref[...] += ce


# ----------------------------- Pallas wrapper --------------------------------

def fused_ocr_image_loss(im1, im2, pred_oh, gt_oh, weights, *,
                         num_parts=2, max_tile_rows=2048):
    """Returns loss1 + loss2 as a scalar (single pallas_call).

    loss1 = mean over plates of per-plate weighted CE on one-hot 'logits'
    loss2 = mean(|im1 - im2|) over all image elements
    """
    total = int(im1.size)
    assert int(im2.size) == total
    rows = int(pl.cdiv(total, LANES))

    # Only shard across TensorCores when every part gets at least one full
    # tile; otherwise the extra part is pure overhead (serial loop on v5e/v6e,
    # duplicated finalize everywhere).
    if rows < num_parts * max_tile_rows:
        num_parts = 1

    # Tile sizing: big lane-dense blocks so the mem-bound L1 pass hits the HBM
    # roofline. 2048x128xf32 = 1 MiB/block -> ~4 MiB double-buffered for both
    # inputs; well within the default scoped VMEM on v5e/v6e/v7x.
    rows_per_part = int(pl.cdiv(rows, num_parts))
    tile_rows = int(min(max_tile_rows,
                        int(pl.cdiv(rows_per_part, SUBLANES)) * SUBLANES))
    tile_rows = max(tile_rows, SUBLANES)
    steps_per_part = int(pl.cdiv(rows_per_part, tile_rows))
    padded_rows = num_parts * steps_per_part * tile_rows
    padded_total = padded_rows * LANES

    def to_slab(x):
        # Keep native dtype (cast happens in-kernel). Zero-pad so arbitrary
        # image shapes work — padded zeros contribute 0 to |a - b|.
        flat = jnp.ravel(x)
        pad = padded_total - total
        if pad:
            flat = jnp.concatenate([flat, jnp.zeros((pad,), dtype=flat.dtype)])
        return flat.reshape(padded_rows, LANES)

    a2 = to_slab(im1)
    b2 = to_slab(im2)

    N, K, C = pred_oh.shape
    pred_f = pred_oh.astype(jnp.float32)
    gt_f = gt_oh.astype(jnp.float32)
    w3 = weights.reshape(N, 1, C).astype(jnp.float32)

    kernel = functools.partial(_fused_loss_kernel,
                               inv_total=1.0 / float(total),
                               inv_plates=1.0 / float(N))

    def img_map(p, i):
        return (p * steps_per_part + i, 0)

    partials = pl.pallas_call(
        kernel,
        out_shape=jax.ShapeDtypeStruct((num_parts, 1, 1), jnp.float32),
        grid_spec=pltpu.PrefetchScalarGridSpec(
            num_scalar_prefetch=0,
            grid=(num_parts, steps_per_part),
            in_specs=[
                pl.BlockSpec((tile_rows, LANES), img_map),
                pl.BlockSpec((tile_rows, LANES), img_map),
                # Full-block, constant-index CE tensors: fetched once, resident
                # in VMEM across the whole grid.
                pl.BlockSpec((N, K, C), lambda p, i: (0, 0, 0)),
                pl.BlockSpec((N, K, C), lambda p, i: (0, 0, 0)),
                pl.BlockSpec((N, 1, C), lambda p, i: (0, 0, 0)),
            ],
            out_specs=pl.BlockSpec((1, 1, 1), lambda p, i: (p, 0, 0)),
            scratch_shapes=[pltpu.VMEM((SUBLANES, LANES), jnp.float32)],
        ),
        compiler_params=pltpu.CompilerParams(
            dimension_semantics=("parallel", "arbitrary")),
    )(a2, b2, pred_f, gt_f, w3)

    # Tiny cross-part combine (num_parts scalars).
    return jnp.sum(partials)


# ------------------------------ host-side glue -------------------------------

class StrLabelConverter:
    """Minimal port of strLabelConverter (string <-> index glue, host only)."""

    def __init__(self, alphabet):
        self.alphabet = '-' + alphabet
        self.dict = {c: i for i, c in enumerate(self.alphabet)}

    def encode_char(self, ch):
        return self.dict[ch]

    def encode_list(self, texts, K=7):
        out = []
        for item in texts:
            row = []
            for i in range(K):
                row.append(self.dict[item[i]] if i < len(item) else 0)
            out.append(row)
        return np.asarray(out, dtype=np.int32)


class OCRPerceptualLoss:
    def __init__(self, alphabet, loss_weight=None):
        self.alphabet = alphabet
        self.converter = StrLabelConverter(alphabet)
        self.weight = loss_weight
        # TODO(synk): loss2 comes from make(loss_specs) in the original repo
        # (config-dependent); a deterministic L1 image loss is used here.
        # TODO(synk): the optional Keras OCR model path (self.load / OCR_pred)
        # is a checkpoint-load code path and is not reproduced.

    @staticmethod
    def layout_penalty(pred_layout, gt_layout):
        penalty = 0.0
        for p, g in zip(pred_layout, gt_layout):
            if p.isdigit() and g.isalpha():
                penalty += 0.4
            elif p.isalpha() and g.isdigit():
                penalty += 0.5
        return penalty

    @staticmethod
    def visually_similar_penalty(pred_char, gt_char, confusing_pairs):
        for pair in confusing_pairs:
            if pred_char in pair and gt_char in pair:
                return 1
        return 0

    def __call__(self, im1, im2, predsSR, gt, confusing_pairs, alpha=1.0):
        pred1_layout, pred2_layout = predsSR, gt

        # host-side string penalty
        penalty = 0.0
        for p, c in zip(pred1_layout, pred2_layout):
            penalty += self.layout_penalty(p, c)
        penalty /= len(pred1_layout)

        K = 7
        C = len(self.alphabet)
        idx1 = self.converter.encode_list(pred1_layout, K=K)    # (N, K)
        idx2 = self.converter.encode_list(pred2_layout, K=K)    # (N, K)
        pred1_oh = jax.nn.one_hot(idx1, C, dtype=jnp.float32)   # (N, K, C)
        gt_oh = jax.nn.one_hot(idx2, C, dtype=jnp.float32)      # (N, K, C)

        N = idx1.shape[0]
        weights = np.ones((N, C), dtype=np.float32)
        for i, (plate1, plate_gt) in enumerate(zip(pred1_layout, pred2_layout)):
            for c1, cg in zip(plate1, plate_gt):
                if self.visually_similar_penalty(c1, cg, confusing_pairs):
                    weights[i, self.converter.encode_char(cg)] += 0.5
        weights = jnp.asarray(weights)

        loss12 = fused_ocr_image_loss(im1, im2, pred1_oh, gt_oh, weights)
        return loss12 + alpha * penalty


# --------------------------- numpy reference check ---------------------------

def np_reference(im1, im2, predsSR, gt, confusing_pairs, alpha, alphabet):
    conv = StrLabelConverter(alphabet)
    K, C = 7, len(alphabet)
    idx1 = conv.encode_list(predsSR, K)
    idx2 = conv.encode_list(gt, K)
    N = idx1.shape[0]
    oh1 = np.eye(C, dtype=np.float32)[idx1]                     # (N, K, C)
    W = np.ones((N, C), dtype=np.float32)
    for i, (p1, pg) in enumerate(zip(predsSR, gt)):
        for c1, cg in zip(p1, pg):
            if any(c1 in pair and cg in pair for pair in confusing_pairs):
                W[i, conv.encode_char(cg)] += 0.5
    lse = np.log(np.sum(np.exp(oh1), axis=-1))                  # (N, K)
    x_t = np.take_along_axis(oh1, idx2[..., None], axis=-1)[..., 0]
    w_t = np.take_along_axis(np.broadcast_to(W[:, None, :], oh1.shape),
                             idx2[..., None], axis=-1)[..., 0]
    loss1 = np.mean(np.sum(w_t * (lse - x_t), -1) / np.sum(w_t, -1))
    loss2 = np.mean(np.abs(np.asarray(im1) - np.asarray(im2)))
    penalty = 0.0
    for p, c in zip(predsSR, gt):
        penalty += OCRPerceptualLoss.layout_penalty(p, c)
    penalty /= len(predsSR)
    return loss1 + loss2 + alpha * penalty


# ----------------------------------- main ------------------------------------

if __name__ == "__main__":
    alphabet = "0123456789ABCDEFGHIJKLMNOPQRSTUVWXYZ"
    confusing_pairs = [("0", "O"), ("1", "I"), ("5", "S"), ("8", "B")]

    key = jax.random.PRNGKey(0)
    k1, k2 = jax.random.split(key)
    # images, NCHW like PyTorch; small synthetic shapes
    im1 = jax.random.uniform(k1, (2, 4, 16, 16), dtype=jnp.float32)
    im2 = jax.random.uniform(k2, (2, 4, 16, 16), dtype=jnp.float32)

    predsSR = ["ABC1234", "XY0OI89"]   # predicted plate strings (K = 7)
    gt_txt  = ["A8CI234", "XYO0189"]   # ground-truth plate strings

    loss_mod = OCRPerceptualLoss(alphabet)
    out = loss_mod(im1, im2, predsSR, gt_txt, confusing_pairs, alpha=1.0)
    out = jax.block_until_ready(out)

    ref = np_reference(im1, im2, predsSR, gt_txt, confusing_pairs, 1.0, alphabet)
    np.testing.assert_allclose(np.asarray(out), ref, rtol=1e-5, atol=1e-5)

    print("KERNEL_OK")
</pallas_src>

<mosaic_0001>
module attributes {stable_mosaic.version = 11 : i64} {
  func.func @_fused_loss_kernel(%arg0: i32, %arg1: i32, %arg2: memref<16x128xf32, #tpu.memory_space<vmem>>, %arg3: memref<16x128xf32, #tpu.memory_space<vmem>>, %arg4: memref<2x7x36xf32, #tpu.memory_space<vmem>>, %arg5: memref<2x7x36xf32, #tpu.memory_space<vmem>>, %arg6: memref<2x1x36xf32, #tpu.memory_space<vmem>>, %arg7: memref<1x1x1xf32, #tpu.memory_space<vmem>>, %arg8: memref<8x128xf32, #tpu.memory_space<vmem>>) attributes {dimension_semantics = [#tpu.dimension_semantics<parallel>, #tpu.dimension_semantics<arbitrary>], iteration_bounds = array<i64: 1, 1>, scalar_prefetch = 0 : i64, scratch_operands = 1 : i64, tpu.core_type = #tpu.core_type<tc>, window_params = [{transform_indices = @transform_0, window_bounds = array<i64: 16, 128>}, {transform_indices = @transform_1, window_bounds = array<i64: 16, 128>}, {pipeline_mode = #tpu.pipeline_mode<synchronous>, transform_indices = @transform_2, window_bounds = array<i64: 2, 7, 36>}, {pipeline_mode = #tpu.pipeline_mode<synchronous>, transform_indices = @transform_3, window_bounds = array<i64: 2, 7, 36>}, {pipeline_mode = #tpu.pipeline_mode<synchronous>, transform_indices = @transform_4, window_bounds = array<i64: 2, 1, 36>}, {transform_indices = @transform_5, window_bounds = array<i64: 1, 1, 1>}]} {
    %c0_i32 = arith.constant 0 : i32
    %0 = arith.cmpi eq, %arg1, %c0_i32 : i32
    %1 = arith.extui %0 : i1 to i32
    %c0_i32_0 = arith.constant 0 : i32
    %2 = arith.cmpi ne, %1, %c0_i32_0 : i32
    scf.if %2 {
      %cst_10 = arith.constant 0.000000e+00 : f32
      %15 = vector.broadcast %cst_10 : f32 to vector<8x128xf32>
      %c0_11 = arith.constant 0 : index
      %c0_12 = arith.constant 0 : index
      %16 = vector.load %arg8[%c0_11, %c0_12] : memref<8x128xf32, #tpu.memory_space<vmem>>, vector<8x128xf32>
      tpu.vector_store %arg8[%c0_11, %c0_12], %15 {strides = array<i32>} : memref<8x128xf32, #tpu.memory_space<vmem>>, vector<8x128xf32>,
    } else {
    }
    %c0 = arith.constant 0 : index
    %c0_1 = arith.constant 0 : index
    %3 = vector.load %arg2[%c0, %c0_1] : memref<16x128xf32, #tpu.memory_space<vmem>>, vector<16x128xf32>
    %c0_2 = arith.constant 0 : index
    %c0_3 = arith.constant 0 : index
    %4 = vector.load %arg3[%c0_2, %c0_3] : memref<16x128xf32, #tpu.memory_space<vmem>>, vector<16x128xf32>
    %5 = arith.subf %3, %4 : vector<16x128xf32>
    %6 = math.absf %5 : vector<16x128xf32>
    %c0_4 = arith.constant 0 : index
    %c0_5 = arith.constant 0 : index
    %7 = vector.load %arg8[%c0_4, %c0_5] : memref<8x128xf32, #tpu.memory_space<vmem>>, vector<8x128xf32>
    %8 = vector.shape_cast %6 : vector<16x128xf32> to vector<2x8x128xf32>
    %cst = arith.constant dense<0.000000e+00> : vector<8x128xf32>
    %9 = vector.multi_reduction <add>, %8, %cst [0] : vector<2x8x128xf32> to vector<8x128xf32>
    %10 = arith.addf %7, %9 : vector<8x128xf32>
    %c0_6 = arith.constant 0 : index
    %c0_7 = arith.constant 0 : index
    %11 = vector.load %arg8[%c0_6, %c0_7] : memref<8x128xf32, #tpu.memory_space<vmem>>, vector<8x128xf32>
    tpu.vector_store %arg8[%c0_6, %c0_7], %10 {strides = array<i32>} : memref<8x128xf32, #tpu.memory_space<vmem>>, vector<8x128xf32>,
    %c0_i32_8 = arith.constant 0 : i32
    %12 = arith.cmpi eq, %arg1, %c0_i32_8 : i32
    %13 = arith.extui %12 : i1 to i32
    %c0_i32_9 = arith.constant 0 : i32
    %14 = arith.cmpi ne, %13, %c0_i32_9 : i32
    scf.if %14 {
      %c0_10 = arith.constant 0 : index
      %c0_11 = arith.constant 0 : index
      %15 = vector.load %arg8[%c0_10, %c0_11] : memref<8x128xf32, #tpu.memory_space<vmem>>, vector<8x128xf32>
      %cst_12 = arith.constant dense<0.000000e+00> : vector<8xf32>
      %16 = vector.multi_reduction <add>, %15, %cst_12 [1] : vector<8x128xf32> to vector<8xf32>
      %17 = vector.shape_cast %16 : vector<8xf32> to vector<8x1xf32>
      %cst_13 = arith.constant dense<0.000000e+00> : vector<1xf32>
      %18 = vector.multi_reduction <add>, %17, %cst_13 [0] : vector<8x1xf32> to vector<1xf32>
      %19 = vector.shape_cast %18 : vector<1xf32> to vector<1x1xf32>
      %20 = vector.shape_cast %19 : vector<1x1xf32> to vector<1x1x1xf32>
      %cst_14 = arith.constant 4.8828125E-4 : f32
      %21 = vector.broadcast %cst_14 : f32 to vector<1x1x1xf32>
      %22 = arith.mulf %20, %21 : vector<1x1x1xf32>
      %c0_15 = arith.constant 0 : index
      %c0_16 = arith.constant 0 : index
      %c0_17 = arith.constant 0 : index
      %23 = vector.load %arg7[%c0_15, %c0_16, %c0_17] : memref<1x1x1xf32, #tpu.memory_space<vmem>>, vector<1x1x1xf32>
      tpu.vector_store %arg7[%c0_15, %c0_16, %c0_17], %22 {strides = array<i32>} : memref<1x1x1xf32, #tpu.memory_space<vmem>>, vector<1x1x1xf32>,
      %c0_i32_18 = arith.constant 0 : i32
      %24 = arith.cmpi eq, %arg0, %c0_i32_18 : i32
      %25 = arith.extui %24 : i1 to i32
      %c0_i32_19 = arith.constant 0 : i32
      %26 = arith.cmpi ne, %25, %c0_i32_19 : i32
      scf.if %26 {
        %c0_20 = arith.constant 0 : index
        %c0_21 = arith.constant 0 : index
        %c0_22 = arith.constant 0 : index
        %27 = vector.load %arg4[%c0_20, %c0_21, %c0_22] : memref<2x7x36xf32, #tpu.memory_space<vmem>>, vector<2x7x36xf32>
        %c0_23 = arith.constant 0 : index
        %c0_24 = arith.constant 0 : index
        %c0_25 = arith.constant 0 : index
        %28 = vector.load %arg5[%c0_23, %c0_24, %c0_25] : memref<2x7x36xf32, #tpu.memory_space<vmem>>, vector<2x7x36xf32>
        %c0_26 = arith.constant 0 : index
        %c0_27 = arith.constant 0 : index
        %c0_28 = arith.constant 0 : index
        %29 = vector.load %arg6[%c0_26, %c0_27, %c0_28] : memref<2x1x36xf32, #tpu.memory_space<vmem>>, vector<2x1x36xf32>
        %cst_29 = arith.constant dense<0xFF800000> : vector<2x7xf32>
        %30 = vector.multi_reduction <maximumf>, %27, %cst_29 [2] : vector<2x7x36xf32> to vector<2x7xf32>
        %31 = vector.shape_cast %30 : vector<2x7xf32> to vector<2x7x1xf32>
        %32 = vector.broadcast %31 : vector<2x7x1xf32> to vector<2x7x36xf32>
        %33 = arith.subf %27, %32 : vector<2x7x36xf32>
        %34 = math.exp %33 : vector<2x7x36xf32>
        %cst_30 = arith.constant dense<0.000000e+00> : vector<2x7xf32>
        %35 = vector.multi_reduction <add>, %34, %cst_30 [2] : vector<2x7x36xf32> to vector<2x7xf32>
        %36 = vector.shape_cast %35 : vector<2x7xf32> to vector<2x7x1xf32>
        %37 = math.log %36 : vector<2x7x1xf32>
        %38 = arith.addf %37, %31 : vector<2x7x1xf32>
        %39 = arith.mulf %27, %28 : vector<2x7x36xf32>
        %cst_31 = arith.constant dense<0.000000e+00> : vector<2x7xf32>
        %40 = vector.multi_reduction <add>, %39, %cst_31 [2] : vector<2x7x36xf32> to vector<2x7xf32>
        %41 = vector.shape_cast %40 : vector<2x7xf32> to vector<2x7x1xf32>
        %42 = vector.broadcast %29 : vector<2x1x36xf32> to vector<2x7x36xf32>
        %43 = arith.mulf %42, %28 : vector<2x7x36xf32>
        %cst_32 = arith.constant dense<0.000000e+00> : vector<2x7xf32>
        %44 = vector.multi_reduction <add>, %43, %cst_32 [2] : vector<2x7x36xf32> to vector<2x7xf32>
        %45 = vector.shape_cast %44 : vector<2x7xf32> to vector<2x7x1xf32>
        %46 = arith.subf %38, %41 : vector<2x7x1xf32>
        %47 = arith.mulf %45, %46 : vector<2x7x1xf32>
        %cst_33 = arith.constant dense<0.000000e+00> : vector<2x1xf32>
        %48 = vector.multi_reduction <add>, %47, %cst_33 [1] : vector<2x7x1xf32> to vector<2x1xf32>
        %49 = vector.shape_cast %48 : vector<2x1xf32> to vector<2x1x1xf32>
        %cst_34 = arith.constant dense<0.000000e+00> : vector<2x1xf32>
        %50 = vector.multi_reduction <add>, %45, %cst_34 [1] : vector<2x7x1xf32> to vector<2x1xf32>
        %51 = vector.shape_cast %50 : vector<2x1xf32> to vector<2x1x1xf32>
        %52 = arith.divf %49, %51 : vector<2x1x1xf32>
        %cst_35 = arith.constant dense<0.000000e+00> : vector<1x1xf32>
        %53 = vector.multi_reduction <add>, %52, %cst_35 [0] : vector<2x1x1xf32> to vector<1x1xf32>
        %54 = vector.shape_cast %53 : vector<1x1xf32> to vector<1x1x1xf32>
        %cst_36 = arith.constant 5.000000e-01 : f32
        %55 = vector.broadcast %cst_36 : f32 to vector<1x1x1xf32>
        %56 = arith.mulf %54, %55 : vector<1x1x1xf32>
        %c0_37 = arith.constant 0 : index
        %c0_38 = arith.constant 0 : index
        %c0_39 = arith.constant 0 : index
        %57 = vector.load %arg7[%c0_37, %c0_38, %c0_39] : memref<1x1x1xf32, #tpu.memory_space<vmem>>, vector<1x1x1xf32>
        %58 = arith.addf %57, %56 : vector<1x1x1xf32>
        %c0_40 = arith.constant 0 : index
        %c0_41 = arith.constant 0 : index
        %c0_42 = arith.constant 0 : index
        %59 = vector.load %arg7[%c0_40, %c0_41, %c0_42] : memref<1x1x1xf32, #tpu.memory_space<vmem>>, vector<1x1x1xf32>
        tpu.vector_store %arg7[%c0_40, %c0_41, %c0_42], %58 {strides = array<i32>} : memref<1x1x1xf32, #tpu.memory_space<vmem>>, vector<1x1x1xf32>,
      } else {
      }
    } else {
    }
    return
  }
  func.func @transform_0(%arg0: i32, %arg1: i32) -> (i32, i32) {
    %c1_i32 = arith.constant 1 : i32
    %0 = arith.muli %arg0, %c1_i32 : i32
    %1 = arith.addi %0, %arg1 : i32
    %c0_i32 = arith.constant 0 : i32
    %c0_i32_0 = arith.constant 0 : i32
    return %1, %c0_i32 : i32, i32
  }
  func.func @transform_1(%arg0: i32, %arg1: i32) -> (i32, i32) {
    %c1_i32 = arith.constant 1 : i32
    %0 = arith.muli %arg0, %c1_i32 : i32
    %1 = arith.addi %0, %arg1 : i32
    %c0_i32 = arith.constant 0 : i32
    %c0_i32_0 = arith.constant 0 : i32
    return %1, %c0_i32 : i32, i32
  }
  func.func @transform_2(%arg0: i32, %arg1: i32) -> (i32, i32, i32) {
    %c0_i32 = arith.constant 0 : i32
    %c0_i32_0 = arith.constant 0 : i32
    %c0_i32_1 = arith.constant 0 : i32
    %c0_i32_2 = arith.constant 0 : i32
    return %c0_i32, %c0_i32_0, %c0_i32_1 : i32, i32, i32
  }
  func.func @transform_3(%arg0: i32, %arg1: i32) -> (i32, i32, i32) {
    %c0_i32 = arith.constant 0 : i32
    %c0_i32_0 = arith.constant 0 : i32
    %c0_i32_1 = arith.constant 0 : i32
    %c0_i32_2 = arith.constant 0 : i32
    return %c0_i32, %c0_i32_0, %c0_i32_1 : i32, i32, i32
  }
  func.func @transform_4(%arg0: i32, %arg1: i32) -> (i32, i32, i32) {
    %c0_i32 = arith.constant 0 : i32
    %c0_i32_0 = arith.constant 0 : i32
    %c0_i32_1 = arith.constant 0 : i32
    %c0_i32_2 = arith.constant 0 : i32
    return %c0_i32, %c0_i32_0, %c0_i32_1 : i32, i32, i32
  }
  func.func @transform_5(%arg0: i32, %arg1: i32) -> (i32, i32, i32) {
    %c0_i32 = arith.constant 0 : i32
    %c0_i32_0 = arith.constant 0 : i32
    %c0_i32_1 = arith.constant 0 : i32
    return %arg0, %c0_i32, %c0_i32_0 : i32, i32, i32
  }
}

</mosaic_0001>

<llo_original>
// kernel: tpu_custom_call.1
$region0: #{tpu_custom_call.1}
  #allocation0 [shape = 'u32[]', space=smem, size = 0x4, offset = 0x4, fixed_abs, tag = 'smem constant byte address 0x4 - core index']
  #allocation1 [shape = 'u32[72,128]{1,0:T(1,128)}', space=vmem, size = 0x9000, scoped, tag = 'internal scratch']
  #allocation2 [shape = 'f32[8,128]{1,0:T(8,128)}', space=vmem, size = 0x1000, scoped, tag = 'scratch operand']
  %s0 = inlined_call_operand.vmem [shape: f32[16,128], index: 0, kind: input, shape index: {}]
  %s1 = inlined_call_operand.vmem [shape: f32[16,128], index: 1, kind: input, shape index: {}]
  %s2 = inlined_call_operand.vmem [shape: f32[2,7,36], index: 2, kind: input, shape index: {}]
  %s3 = inlined_call_operand.vmem [shape: f32[2,7,36], index: 3, kind: input, shape index: {}]
  %s4 = inlined_call_operand.vmem [shape: f32[2,1,36], index: 4, kind: input, shape index: {}]
  %s5 = inlined_call_operand.hbm [shape: f32[1,1,1], index: 5, kind: output, shape index: {}]
  %s6 = sld [smem:[#allocation0]]
  $region42: #{tpu_custom_call.1} parent=0
    _
  %s8 = ssub.s32 1, %s6
  %s9 = scalar_select 0, %s8, %s6
  $region1: #{tpu_custom_call.1} parent=0
    #allocation3 [shape = 'u8[512]{0}', space=vmem, size = 0x400, scoped, tag = 'output window, operand 0, single buffered']
    #allocation4 [shape = 's32[1]{0}', space=sflag, size = 0x4, scoped, tag = 'scoped memory for tpu_custom_call.1']
    %10 = vsyncpa [#allocation4], 0
    // Predicated region
    $region2: #{tpu_custom_call.1} parent=1 // pred_check
      _
    $region3: #{tpu_custom_call.1} parent=1 // pred_check_branch
      %12 = sbr.rel (0) target = $region5
    $region4: #{tpu_custom_call.1} parent=1 // pred_region
      %s13 = sadd.s32 0, 0
      %s14 = smul.u32 2, %s13
      %p15 = scmp.lt.s32.totalorder %s14, 1
      %s16 = scalar_select %p15, %s14, 1
      %s17 = smul.addr %s16, 8
      %s18 = scalar_lea.vmem %s0, %s17
      %s19 = sadd.s32 0, 0
      %s20 = smul.u32 2, %s19
    $region5: #{tpu_custom_call.1} parent=1 // pred_fallthru
      _
    // Predicated region
    $region6: #{tpu_custom_call.1} parent=1 // pred_check
      _
    $region7: #{tpu_custom_call.1} parent=1 // pred_check_branch
      %22 = sbr.rel (0) target = $region9
    $region8: #{tpu_custom_call.1} parent=1 // pred_region
      %s23 = sadd.s32 0, 0
      %s24 = smul.u32 2, %s23
      %p25 = scmp.lt.s32.totalorder %s24, 1
      %s26 = scalar_select %p25, %s24, 1
      %s27 = smul.addr %s26, 8
      %s28 = scalar_lea.vmem %s1, %s27
      %s29 = sadd.s32 0, 0
      %s30 = smul.u32 2, %s29
    $region9: #{tpu_custom_call.1} parent=1 // pred_fallthru
      _
    // Predicated region
    $region10: #{tpu_custom_call.1} parent=1 // pred_check
      _
    $region11: #{tpu_custom_call.1} parent=1 // pred_check_branch
      %32 = sbr.rel (0) target = $region13
    $region12: #{tpu_custom_call.1} parent=1 // pred_region
      _
    $region13: #{tpu_custom_call.1} parent=1 // pred_fallthru
      _
    // Predicated region
    $region14: #{tpu_custom_call.1} parent=1 // pred_check
      _
    $region15: #{tpu_custom_call.1} parent=1 // pred_check_branch
      %34 = sbr.rel (0) target = $region17
    $region16: #{tpu_custom_call.1} parent=1 // pred_region
      _
    $region17: #{tpu_custom_call.1} parent=1 // pred_fallthru
      _
    // Predicated region
    $region18: #{tpu_custom_call.1} parent=1 // pred_check
      _
    $region19: #{tpu_custom_call.1} parent=1 // pred_check_branch
      %36 = sbr.rel (0) target = $region21
    $region20: #{tpu_custom_call.1} parent=1 // pred_region
      _
    $region21: #{tpu_custom_call.1} parent=1 // pred_fallthru
      _
    %s37 = sadd.s32 0, 0
    %s38 = smul.u32 2, %s37
    %p39 = scmp.lt.s32.totalorder %s38, 1
    %s40 = scalar_select %p39, %s38, 1
    %s41 = smul.addr %s40, 8
    %s42 = scalar_lea.vmem %s0, %s41
    %s43 = sadd.s32 0, 0
    %s44 = smul.u32 2, %s43
    %p45 = scmp.lt.s32.totalorder %s44, 1
    %s46 = scalar_select %p45, %s44, 1
    %s47 = smul.addr %s46, 8
    %s48 = scalar_lea.vmem %s1, %s47
    %s49 = sadd.s32 0, 0
    %s50 = smul.u32 2, %s49
    %p51 = scmp.lt.s32.totalorder %s50, 1
    %s52 = scalar_select %p51, %s50, 1
    %s53 = smul.addr %s52, 8
    %s54 = scalar_lea.vmem %s0, %s53
    %s55 = sadd.s32 0, 0
    %s56 = smul.u32 2, %s55
    %s57 = sadd.s32 0, 0
    %s58 = smul.u32 2, %s57
    %p59 = scmp.lt.s32.totalorder %s58, 1
    %s60 = scalar_select %p59, %s58, 1
    %s61 = smul.addr %s60, 8
    %s62 = scalar_lea.vmem %s1, %s61
    %s63 = sadd.s32 0, 0
    %s64 = smul.u32 2, %s63
    %p65 = scmp.eq.s32.totalorder 0, 0
    // Predicated region
    $region22: #{tpu_custom_call.1} parent=1 // pred_check
      %p66 = pneg %p65
    $region23: #{tpu_custom_call.1} parent=1 // pred_check_branch
      %68 = sbr.rel (%p66) target = $region25
    $region24: #{tpu_custom_call.1} parent=1 // pred_region
      %69 = vst [vmem:[#allocation2] sm:$0xff] 0.0
    $region25: #{tpu_custom_call.1} parent=1 // pred_fallthru
      _
    %v70 = vld [vmem:[%s54] sm:$0xff]
    %v71 = vld [vmem:[%s54 + $0x8] sm:$0xff]
    %v72 = vld [vmem:[%s62] sm:$0xff]
    %v73 = vld [vmem:[%s62 + $0x8] sm:$0xff]
    %v74 = vsub.f32 %v70, %v72
    %v75 = vsub.f32 %v71, %v73
    %v76 = vand.u32 2147483647, %v74
    %v77 = vand.u32 2147483647, %v75
    %v78 = vld [vmem:[#allocation2] sm:$0xff]
    %v79 = vadd.f32 %v76, %v77
    %v80 = vadd.f32 %v78, %v79
    %81 = vst [vmem:[#allocation2] sm:$0xff] %v80
    // Predicated region
    $region26: #{tpu_custom_call.1} parent=1 // pred_check
      %p82 = pneg %p65
    $region27: #{tpu_custom_call.1} parent=1 // pred_check_branch
      %84 = sbr.rel (%p82) target = $region29
    $region28: #{tpu_custom_call.1} parent=1 // pred_region
      %v85 = vld [vmem:[#allocation2] sm:$0xff]
      %86 = vadd.xlane.f32.xlu0 %v85
      %v87 = vpop.xlane.xlu0 %86
      %v88 = vrot.slane %v87, 4
      %v89 = vadd.f32 %v87, %v88
      %v90 = vrot.slane %v89, 2
      %v91 = vadd.f32 %v89, %v90
      %v92 = vrot.slane %v91, 1
      %v93 = vadd.f32 %v91, %v92
      %v94 = vmul.f32 %v93, 0.00048828125
      %vm95 = vcmask 0
      %96 = vst.msk [vmem:[#allocation3] sm:$0x1] %vm95, %v94
      %p97 = scmp.eq.s32.totalorder 0, 0
      // Predicated region
      $region30: #{tpu_custom_call.1} parent=28 // pred_check
        %p98 = pneg %p97
      $region31: #{tpu_custom_call.1} parent=28 // pred_check_branch
        %100 = sbr.rel (%p98) target = $region33
      $region32: #{tpu_custom_call.1} parent=28 // pred_region
        %v101 = vld [vmem:[%s2] sm:$0x7f]
        %v102 = vld [vmem:[%s2 + $0x8] sm:$0x7f]
        %v103 = vld [vmem:[%s3] sm:$0x7f]
        %v104 = vld [vmem:[%s3 + $0x8] sm:$0x7f]
        %v105 = vld [vmem:[%s4] sm:$0x1]
        %v106 = vld [vmem:[%s4 + $0x1] sm:$0x1]
        %vm107 = vcmask 292864
        %v108 = vsel %vm107, %v101, -inf
        %109 = vmax.xlane.f32.xlu0 %v108
        %v110 = vpop.xlane.xlu0 %109
        %v111 = vsel %vm107, %v102, -inf
        %112 = vmax.xlane.f32.xlu0 %v111
        %v113 = vpop.xlane.xlu0 %112
        %v114 = vsub.f32 %v101, %v110
        %v115 = vsub.f32 %v102, %v113
        %v116 = vmul.f32 %v114, 1.442695
        %v117 = vpow.pop %v116
        %v118 = vmul.f32 %v115, 1.442695
        %v119 = vpow.pop %v118
        %v120 = vsel %vm107, %v117, 0.0
        %121 = vadd.xlane.f32.xlu0 %v120
        %v122 = vpop.xlane.xlu0 %121
        %v123 = vsel %vm107, %v119, 0.0
        %124 = vadd.xlane.f32.xlu0 %v123
        %v125 = vpop.xlane.xlu0 %124
        %v126 = vlog2.pop %v122
        %v127 = vmul.f32 %v126, 0.6931472
        %v128 = vlog2.pop %v125
        %v129 = vmul.f32 %v128, 0.6931472
        %v130 = vadd.f32 %v127, %v110
        %v131 = vadd.f32 %v129, %v113
        %v132 = vmul.f32 %v101, %v103
        %v133 = vmul.f32 %v102, %v104
        %v134 = vsel %vm107, %v132, 0.0
        %135 = vadd.xlane.f32.xlu0 %v134
        %v136 = vpop.xlane.xlu0 %135
        %v137 = vsel %vm107, %v133, 0.0
        %138 = vadd.xlane.f32.xlu0 %v137
        %v139 = vpop.xlane.xlu0 %138
        %v142 = vperm.slane %v105, 0
        %v143 = vperm.slane %v106, 0
        %v146 = vmul.f32 %v142, %v103
        %v147 = vmul.f32 %v143, %v104
        %v148 = vsel %vm107, %v146, 0.0
        %149 = vadd.xlane.f32.xlu0 %v148
        %v150 = vpop.xlane.xlu0 %149
        %v151 = vsel %vm107, %v147, 0.0
        %152 = vadd.xlane.f32.xlu0 %v151
        %v153 = vpop.xlane.xlu0 %152
        %v154 = vsub.f32 %v130, %v136
        %v155 = vsub.f32 %v131, %v139
        %v156 = vmul.f32 %v150, %v154
        %v157 = vmul.f32 %v153, %v155
        %vm158 = vcmask 1046528
        %v159 = vsel %vm158, %v156, 0.0
        %v160 = vrot.slane %v159, 4
        %v161 = vadd.f32 %v159, %v160
        %v162 = vrot.slane %v161, 2
        %v163 = vadd.f32 %v161, %v162
        %v164 = vrot.slane %v163, 1
        %v165 = vadd.f32 %v163, %v164
        %v166 = vsel %vm158, %v157, 0.0
        %v167 = vrot.slane %v166, 4
        %v168 = vadd.f32 %v166, %v167
        %v169 = vrot.slane %v168, 2
        %v170 = vadd.f32 %v168, %v169
        %v171 = vrot.slane %v170, 1
        %v172 = vadd.f32 %v170, %v171
        %v173 = vsel %vm158, %v150, 0.0
        %v174 = vrot.slane %v173, 4
        %v175 = vadd.f32 %v173, %v174
        %v176 = vrot.slane %v175, 2
        %v177 = vadd.f32 %v175, %v176
        %v178 = vrot.slane %v177, 1
        %v179 = vadd.f32 %v177, %v178
        %v180 = vsel %vm158, %v153, 0.0
        %v181 = vrot.slane %v180, 4
        %v182 = vadd.f32 %v180, %v181
        %v183 = vrot.slane %v182, 2
        %v184 = vadd.f32 %v182, %v183
        %v185 = vrot.slane %v184, 1
        %v186 = vadd.f32 %v184, %v185
        %v187 = vrcp.pop %v179
        %v188 = vmul.f32 %v179, %v187
        %v189 = vsub.f32 1.0, %v188
        %v190 = vmul.f32 %v187, %v189
        %v191 = vadd.f32 %v187, %v190
        %vm192 = vweird.f32 %v179
        %vm193 = vweird.f32 %v187
        %vm194 = vmor %vm192, %vm193
        %v195 = vsel %vm194, %v187, %v191
        %v196 = vand.u32 2147483647, %v179
        %vm197 = vcmp.eq.f32.partialorder %v196, 8.507059e+37
        %v198 = vand.u32 %v179, 2147483648
        %v199 = vor.u32 1.1754944e-38, %v198
        %v200 = vsel %vm197, %v199, %v195
        %v201 = vmul.f32 %v165, %v200
        %v202 = vrcp.pop %v186
        %v203 = vmul.f32 %v186, %v202
        %v204 = vsub.f32 1.0, %v203
        %v205 = vmul.f32 %v202, %v204
        %v206 = vadd.f32 %v202, %v205
        %vm207 = vweird.f32 %v186
        %vm208 = vweird.f32 %v202
        %vm209 = vmor %vm207, %vm208
        %v210 = vsel %vm209, %v202, %v206
        %v211 = vand.u32 2147483647, %v186
        %vm212 = vcmp.eq.f32.partialorder %v211, 8.507059e+37
        %v213 = vand.u32 %v186, 2147483648
        %v214 = vor.u32 1.1754944e-38, %v213
        %v215 = vsel %vm212, %v214, %v210
        %v216 = vmul.f32 %v172, %v215
        %v217 = vadd.f32 %v201, %v216
        %v218 = vmul.f32 %v217, 0.5
        %v219 = vld [vmem:[#allocation3] sm:$0x1]
        %v220 = vadd.f32 %v219, %v218
        %221 = vst.msk [vmem:[#allocation3] sm:$0x1] %vm95, %v220
      $region33: #{tpu_custom_call.1} parent=28 // pred_fallthru
        _
    $region29: #{tpu_custom_call.1} parent=1 // pred_fallthru
      _
    // Predicated region
    $region34: #{tpu_custom_call.1} parent=1 // pred_check
      _
    $region35: #{tpu_custom_call.1} parent=1 // pred_check_branch
      %223 = sbr.rel (0) target = $region37
    $region36: #{tpu_custom_call.1} parent=1 // pred_region
      %225 = vsyncadd [#allocation4], 0
      %s227 = sshll.u32 [#allocation3], 4
      %s228 = int_to_ptr.vmem [resolvable:$true] %s227
      %s229 = sshll.u32 %s5, 4
      %s230 = int_to_ptr.hbm [resolvable:$true] %s229
      %232 = dma.vmem_to_hbm [thread:$0]  %s228, 16, %s230, [#allocation4]
    $region37: #{tpu_custom_call.1} parent=1 // pred_fallthru
      _
    // Predicated region
    $region38: #{tpu_custom_call.1} parent=1 // pred_check
      _
    $region39: #{tpu_custom_call.1} parent=1 // pred_check_branch
      %234 = sbr.rel (0) target = $region41
    $region40: #{tpu_custom_call.1} parent=1 // pred_region
      %236 = dma.done [#allocation4], 16
    $region41: #{tpu_custom_call.1} parent=1 // pred_fallthru
      _
    %237 = vsyncpa [#allocation4], 1

</llo_original>
